<compile_context>
chip_gen: v7x
topology: tpu7x:2x2x1
jax: 0.10.0
libtpu: 0.0.40
codegen_flags: <defaults>
</compile_context>

<pallas_src>
import jax
import jax.numpy as jnp
from jax.experimental import pallas as pl
from jax.experimental.pallas import tpu as pltpu

# ----------------------------- config (small, consistent with the module) ----
B = 2          # batch
N = 8          # objects per image (36 in full LXMERT)
FEAT_DIM = 64  # visual feature dim (2048 in full LXMERT)
POS_DIM = 4    # box / position dim
H = 32         # hidden size (768 in full LXMERT)
LN_EPS = 1e-12
R = B * N      # rows after folding batch into the sublane dim
TM = 8         # row tile -> grid of 2 "parallel" steps at toy size

# Packed-parameter row layout: rows [0, POS_DIM) hold W_box ([in, out]),
# then b_visn, 0.5*g_visn, 0.5*beta_visn, b_box, 0.5*g_box, 0.5*beta_box.
_ROW_BV = POS_DIM + 0
_ROW_GV = POS_DIM + 1
_ROW_BETAV = POS_DIM + 2
_ROW_BB = POS_DIM + 3
_ROW_GB = POS_DIM + 4
_ROW_BETAB = POS_DIM + 5
P_ROWS = POS_DIM + 6

# ----------------------------- kernel -----------------------------------------


def _ln(h, g, b):
    """LayerNorm over the last dim, eps=1e-12, f32.

    One-pass statistics: the two cross-lane reductions (sum h, sum h^2) are
    independent, shortening the XLU critical path.  Inputs here are small
    zero-centred activations, so E[x^2]-E[x]^2 cancellation is benign.
    """
    s1 = jnp.mean(h, axis=-1, keepdims=True)
    s2 = jnp.mean(h * h, axis=-1, keepdims=True)
    var = s2 - s1 * s1
    return (h - s1) * jax.lax.rsqrt(var + LN_EPS) * g + b


def _visual_feat_encoder_kernel(feats_ref, boxes_ref, wv_ref, pp_ref, o_ref):
    """Fused: visn_fc + LN, box_fc (VPU FMAs) + LN, sum (0.5 pre-folded)."""
    pp = pp_ref[...]                                   # (P_ROWS, H) packed params

    # --- visual-feature branch: (TM, FEAT_DIM) @ (FEAT_DIM, H) on the MXU ---
    x = jnp.dot(feats_ref[...], wv_ref[...],
                preferred_element_type=jnp.float32)
    x = x + pp[_ROW_BV:_ROW_BV + 1, :]
    x = _ln(x, pp[_ROW_GV:_ROW_GV + 1, :], pp[_ROW_BETAV:_ROW_BETAV + 1, :])

    # --- box / position branch: K=4 contraction as unrolled VPU FMAs -------
    bx = boxes_ref[...].astype(jnp.float32)            # (TM, POS_DIM)
    y = jnp.broadcast_to(pp[_ROW_BB:_ROW_BB + 1, :], x.shape)
    for k in range(POS_DIM):                           # static unroll
        y = y + bx[:, k:k + 1] * pp[k:k + 1, :]
    y = _ln(y, pp[_ROW_GB:_ROW_GB + 1, :], pp[_ROW_BETAB:_ROW_BETAB + 1, :])

    # gamma/beta were pre-scaled by 0.5, so the average is just a sum.
    # Dropout is identity in eval mode.
    o_ref[...] = (x + y).astype(o_ref.dtype)


# ----------------------------- wrapper -----------------------------------------


def pack_params(params):
    """One-time static param transform: consolidate small tensors + fold 0.5."""
    half = jnp.float32(0.5)
    packed = jnp.concatenate(
        [
            params["w_box"],                 # (POS_DIM, H), [in, out] layout
            params["b_visn"],                # (1, H)
            half * params["g_visn"],         # 0.5 folded into gamma/beta
            half * params["beta_visn"],
            params["b_box"],
            half * params["g_box"],
            half * params["beta_box"],
        ],
        axis=0,
    ).astype(jnp.float32)                    # (P_ROWS, H)
    return params["w_visn"].astype(jnp.float32), packed


def visual_feat_encoder(feats, boxes, w_visn, packed_params):
    """feats: (B, N, FEAT_DIM); boxes: (B, N, POS_DIM) -> (B, N, H)."""
    b, n = feats.shape[0], feats.shape[1]
    rows = b * n
    feats2 = feats.reshape(rows, FEAT_DIM)   # fold batch into the sublane dim
    boxes2 = boxes.reshape(rows, POS_DIM)

    grid = (rows // TM,)                     # row-tiled, ≥2 parallel steps

    out = pl.pallas_call(
        _visual_feat_encoder_kernel,
        out_shape=jax.ShapeDtypeStruct((rows, H), feats.dtype),
        grid=grid,
        in_specs=[
            pl.BlockSpec((TM, FEAT_DIM), lambda i: (i, 0)),   # streamed rows
            pl.BlockSpec((TM, POS_DIM), lambda i: (i, 0)),    # streamed rows
            pl.BlockSpec((FEAT_DIM, H), lambda i: (0, 0)),    # resident weight
            pl.BlockSpec((P_ROWS, H), lambda i: (0, 0)),      # resident packed params
        ],
        out_specs=pl.BlockSpec((TM, H), lambda i: (i, 0)),
        compiler_params=pltpu.CompilerParams(
            dimension_semantics=("parallel",)),
    )(feats2, boxes2, w_visn, packed_params)

    return out.reshape(b, n, H)


# ----------------------------- reference (pure JAX, original semantics) --------


def _ref_forward(feats, boxes, params):
    def ln(t, g, b):
        mu = t.mean(-1, keepdims=True)
        var = ((t - mu) ** 2).mean(-1, keepdims=True)
        return (t - mu) / jnp.sqrt(var + LN_EPS) * g + b

    x = ln(feats @ params["w_visn"] + params["b_visn"],
           params["g_visn"], params["beta_visn"])
    y = ln(boxes @ params["w_box"] + params["b_box"],
           params["g_box"], params["beta_box"])
    return 0.5 * (x + y)   # dropout = identity (eval)


# ----------------------------- main ---------------------------------------------

if __name__ == "__main__":
    key = jax.random.PRNGKey(0)
    keys = jax.random.split(key, 6)

    def w(k, shape, scale=0.02):
        return (scale * jax.random.normal(k, shape)).astype(jnp.float32)

    params = {
        # weights stored [in, out] (transposed vs torch.nn.Linear.weight)
        "w_visn": w(keys[0], (FEAT_DIM, H)),
        "b_visn": w(keys[1], (1, H)),
        "g_visn": jnp.ones((1, H), jnp.float32),
        "beta_visn": jnp.zeros((1, H), jnp.float32),
        "w_box": w(keys[2], (POS_DIM, H)),
        "b_box": w(keys[3], (1, H)),
        "g_box": jnp.ones((1, H), jnp.float32),
        "beta_box": jnp.zeros((1, H), jnp.float32),
    }

    feats = jax.random.normal(keys[4], (B, N, FEAT_DIM), jnp.float32)
    boxes = jax.random.uniform(keys[5], (B, N, POS_DIM), jnp.float32)

    w_visn, packed = pack_params(params)   # one-time static transform
    out = visual_feat_encoder(feats, boxes, w_visn, packed)
    out = jax.block_until_ready(out)

    ref = _ref_forward(feats, boxes, params)
    assert out.shape == (B, N, H)
    assert jnp.allclose(out, ref, atol=1e-4, rtol=1e-4), "mismatch vs reference"

    print("KERNEL_OK")
</pallas_src>

<mosaic_0001>
module attributes {stable_mosaic.version = 11 : i64} {
  func.func @_visual_feat_encoder_kernel(%arg0: i32, %arg1: memref<8x64xf32, #tpu.memory_space<vmem>>, %arg2: memref<8x4xf32, #tpu.memory_space<vmem>>, %arg3: memref<64x32xf32, #tpu.memory_space<vmem>>, %arg4: memref<10x32xf32, #tpu.memory_space<vmem>>, %arg5: memref<8x32xf32, #tpu.memory_space<vmem>>) attributes {dimension_semantics = [#tpu.dimension_semantics<parallel>], iteration_bounds = array<i64: 2>, scalar_prefetch = 0 : i64, scratch_operands = 0 : i64, tpu.core_type = #tpu.core_type<tc>, window_params = [{transform_indices = @transform_0, window_bounds = array<i64: 8, 64>}, {transform_indices = @transform_1, window_bounds = array<i64: 8, 4>}, {pipeline_mode = #tpu.pipeline_mode<synchronous>, transform_indices = @transform_2, window_bounds = array<i64: 64, 32>}, {pipeline_mode = #tpu.pipeline_mode<synchronous>, transform_indices = @transform_3, window_bounds = array<i64: 10, 32>}, {transform_indices = @transform_4, window_bounds = array<i64: 8, 32>}]} {
    %c0 = arith.constant 0 : index
    %c0_0 = arith.constant 0 : index
    %0 = vector.load %arg4[%c0, %c0_0] : memref<10x32xf32, #tpu.memory_space<vmem>>, vector<10x32xf32>
    %c0_1 = arith.constant 0 : index
    %c0_2 = arith.constant 0 : index
    %1 = vector.load %arg1[%c0_1, %c0_2] : memref<8x64xf32, #tpu.memory_space<vmem>>, vector<8x64xf32>
    %c0_3 = arith.constant 0 : index
    %c0_4 = arith.constant 0 : index
    %2 = vector.load %arg3[%c0_3, %c0_4] : memref<64x32xf32, #tpu.memory_space<vmem>>, vector<64x32xf32>
    %cst = arith.constant dense<0.000000e+00> : vector<8x32xf32>
    %3 = tpu.matmul %1, %2, %cst {dimension_numbers = #tpu.dot_dimension_numbers<[1], [0], [0], [1], [0, 0, 1, 1], [], []>} : vector<8x64xf32>, vector<64x32xf32>, vector<8x32xf32> -> vector<8x32xf32>
    %4 = vector.extract_strided_slice %0 {offsets = [4, 0], sizes = [1, 32], strides = [1, 1]} : vector<10x32xf32> to vector<1x32xf32>
    %5 = vector.broadcast %4 : vector<1x32xf32> to vector<8x32xf32>
    %6 = arith.addf %3, %5 : vector<8x32xf32>
    %7 = vector.extract_strided_slice %0 {offsets = [5, 0], sizes = [1, 32], strides = [1, 1]} : vector<10x32xf32> to vector<1x32xf32>
    %8 = vector.extract_strided_slice %0 {offsets = [6, 0], sizes = [1, 32], strides = [1, 1]} : vector<10x32xf32> to vector<1x32xf32>
    %cst_5 = arith.constant dense<0.000000e+00> : vector<8xf32>
    %9 = vector.multi_reduction <add>, %6, %cst_5 [1] : vector<8x32xf32> to vector<8xf32>
    %10 = vector.shape_cast %9 : vector<8xf32> to vector<8x1xf32>
    %cst_6 = arith.constant 3.200000e+01 : f32
    %11 = vector.broadcast %cst_6 : f32 to vector<8x1xf32>
    %12 = arith.divf %10, %11 : vector<8x1xf32>
    %13 = arith.mulf %6, %6 : vector<8x32xf32>
    %cst_7 = arith.constant dense<0.000000e+00> : vector<8xf32>
    %14 = vector.multi_reduction <add>, %13, %cst_7 [1] : vector<8x32xf32> to vector<8xf32>
    %15 = vector.shape_cast %14 : vector<8xf32> to vector<8x1xf32>
    %cst_8 = arith.constant 3.200000e+01 : f32
    %16 = vector.broadcast %cst_8 : f32 to vector<8x1xf32>
    %17 = arith.divf %15, %16 : vector<8x1xf32>
    %18 = arith.mulf %12, %12 : vector<8x1xf32>
    %19 = arith.subf %17, %18 : vector<8x1xf32>
    %20 = vector.broadcast %12 : vector<8x1xf32> to vector<8x32xf32>
    %21 = arith.subf %6, %20 : vector<8x32xf32>
    %cst_9 = arith.constant 9.99999996E-13 : f32
    %22 = vector.broadcast %cst_9 : f32 to vector<8x1xf32>
    %23 = arith.addf %19, %22 : vector<8x1xf32>
    %24 = math.rsqrt %23 : vector<8x1xf32>
    %25 = vector.broadcast %24 : vector<8x1xf32> to vector<8x32xf32>
    %26 = arith.mulf %21, %25 : vector<8x32xf32>
    %27 = vector.broadcast %7 : vector<1x32xf32> to vector<8x32xf32>
    %28 = arith.mulf %26, %27 : vector<8x32xf32>
    %29 = vector.broadcast %8 : vector<1x32xf32> to vector<8x32xf32>
    %30 = arith.addf %28, %29 : vector<8x32xf32>
    %c0_10 = arith.constant 0 : index
    %c0_11 = arith.constant 0 : index
    %31 = vector.load %arg2[%c0_10, %c0_11] : memref<8x4xf32, #tpu.memory_space<vmem>>, vector<8x4xf32>
    %32 = vector.extract_strided_slice %0 {offsets = [7, 0], sizes = [1, 32], strides = [1, 1]} : vector<10x32xf32> to vector<1x32xf32>
    %33 = vector.shape_cast %32 : vector<1x32xf32> to vector<1x32xf32>
    %34 = vector.broadcast %33 : vector<1x32xf32> to vector<8x32xf32>
    %35 = vector.extract_strided_slice %31 {offsets = [0, 0], sizes = [8, 1], strides = [1, 1]} : vector<8x4xf32> to vector<8x1xf32>
    %36 = vector.extract_strided_slice %0 {offsets = [0, 0], sizes = [1, 32], strides = [1, 1]} : vector<10x32xf32> to vector<1x32xf32>
    %37 = vector.broadcast %35 : vector<8x1xf32> to vector<8x32xf32>
    %38 = vector.broadcast %36 : vector<1x32xf32> to vector<8x32xf32>
    %39 = arith.mulf %37, %38 : vector<8x32xf32>
    %40 = arith.addf %34, %39 : vector<8x32xf32>
    %41 = vector.extract_strided_slice %31 {offsets = [0, 1], sizes = [8, 1], strides = [1, 1]} : vector<8x4xf32> to vector<8x1xf32>
    %42 = vector.extract_strided_slice %0 {offsets = [1, 0], sizes = [1, 32], strides = [1, 1]} : vector<10x32xf32> to vector<1x32xf32>
    %43 = vector.broadcast %41 : vector<8x1xf32> to vector<8x32xf32>
    %44 = vector.broadcast %42 : vector<1x32xf32> to vector<8x32xf32>
    %45 = arith.mulf %43, %44 : vector<8x32xf32>
    %46 = arith.addf %40, %45 : vector<8x32xf32>
    %47 = vector.extract_strided_slice %31 {offsets = [0, 2], sizes = [8, 1], strides = [1, 1]} : vector<8x4xf32> to vector<8x1xf32>
    %48 = vector.extract_strided_slice %0 {offsets = [2, 0], sizes = [1, 32], strides = [1, 1]} : vector<10x32xf32> to vector<1x32xf32>
    %49 = vector.broadcast %47 : vector<8x1xf32> to vector<8x32xf32>
    %50 = vector.broadcast %48 : vector<1x32xf32> to vector<8x32xf32>
    %51 = arith.mulf %49, %50 : vector<8x32xf32>
    %52 = arith.addf %46, %51 : vector<8x32xf32>
    %53 = vector.extract_strided_slice %31 {offsets = [0, 3], sizes = [8, 1], strides = [1, 1]} : vector<8x4xf32> to vector<8x1xf32>
    %54 = vector.extract_strided_slice %0 {offsets = [3, 0], sizes = [1, 32], strides = [1, 1]} : vector<10x32xf32> to vector<1x32xf32>
    %55 = vector.broadcast %53 : vector<8x1xf32> to vector<8x32xf32>
    %56 = vector.broadcast %54 : vector<1x32xf32> to vector<8x32xf32>
    %57 = arith.mulf %55, %56 : vector<8x32xf32>
    %58 = arith.addf %52, %57 : vector<8x32xf32>
    %59 = vector.extract_strided_slice %0 {offsets = [8, 0], sizes = [1, 32], strides = [1, 1]} : vector<10x32xf32> to vector<1x32xf32>
    %60 = vector.extract_strided_slice %0 {offsets = [9, 0], sizes = [1, 32], strides = [1, 1]} : vector<10x32xf32> to vector<1x32xf32>
    %cst_12 = arith.constant dense<0.000000e+00> : vector<8xf32>
    %61 = vector.multi_reduction <add>, %58, %cst_12 [1] : vector<8x32xf32> to vector<8xf32>
    %62 = vector.shape_cast %61 : vector<8xf32> to vector<8x1xf32>
    %cst_13 = arith.constant 3.200000e+01 : f32
    %63 = vector.broadcast %cst_13 : f32 to vector<8x1xf32>
    %64 = arith.divf %62, %63 : vector<8x1xf32>
    %65 = arith.mulf %58, %58 : vector<8x32xf32>
    %cst_14 = arith.constant dense<0.000000e+00> : vector<8xf32>
    %66 = vector.multi_reduction <add>, %65, %cst_14 [1] : vector<8x32xf32> to vector<8xf32>
    %67 = vector.shape_cast %66 : vector<8xf32> to vector<8x1xf32>
    %cst_15 = arith.constant 3.200000e+01 : f32
    %68 = vector.broadcast %cst_15 : f32 to vector<8x1xf32>
    %69 = arith.divf %67, %68 : vector<8x1xf32>
    %70 = arith.mulf %64, %64 : vector<8x1xf32>
    %71 = arith.subf %69, %70 : vector<8x1xf32>
    %72 = vector.broadcast %64 : vector<8x1xf32> to vector<8x32xf32>
    %73 = arith.subf %58, %72 : vector<8x32xf32>
    %cst_16 = arith.constant 9.99999996E-13 : f32
    %74 = vector.broadcast %cst_16 : f32 to vector<8x1xf32>
    %75 = arith.addf %71, %74 : vector<8x1xf32>
    %76 = math.rsqrt %75 : vector<8x1xf32>
    %77 = vector.broadcast %76 : vector<8x1xf32> to vector<8x32xf32>
    %78 = arith.mulf %73, %77 : vector<8x32xf32>
    %79 = vector.broadcast %59 : vector<1x32xf32> to vector<8x32xf32>
    %80 = arith.mulf %78, %79 : vector<8x32xf32>
    %81 = vector.broadcast %60 : vector<1x32xf32> to vector<8x32xf32>
    %82 = arith.addf %80, %81 : vector<8x32xf32>
    %83 = arith.addf %30, %82 : vector<8x32xf32>
    %c0_17 = arith.constant 0 : index
    %c0_18 = arith.constant 0 : index
    %84 = vector.load %arg5[%c0_17, %c0_18] : memref<8x32xf32, #tpu.memory_space<vmem>>, vector<8x32xf32>
    tpu.vector_store %arg5[%c0_17, %c0_18], %83 {strides = array<i32>} : memref<8x32xf32, #tpu.memory_space<vmem>>, vector<8x32xf32>,
    return
  }
  func.func @transform_0(%arg0: i32) -> (i32, i32) {
    %c0_i32 = arith.constant 0 : i32
    %c0_i32_0 = arith.constant 0 : i32
    return %arg0, %c0_i32 : i32, i32
  }
  func.func @transform_1(%arg0: i32) -> (i32, i32) {
    %c0_i32 = arith.constant 0 : i32
    %c0_i32_0 = arith.constant 0 : i32
    return %arg0, %c0_i32 : i32, i32
  }
  func.func @transform_2(%arg0: i32) -> (i32, i32) {
    %c0_i32 = arith.constant 0 : i32
    %c0_i32_0 = arith.constant 0 : i32
    %c0_i32_1 = arith.constant 0 : i32
    return %c0_i32, %c0_i32_0 : i32, i32
  }
  func.func @transform_3(%arg0: i32) -> (i32, i32) {
    %c0_i32 = arith.constant 0 : i32
    %c0_i32_0 = arith.constant 0 : i32
    %c0_i32_1 = arith.constant 0 : i32
    return %c0_i32, %c0_i32_0 : i32, i32
  }
  func.func @transform_4(%arg0: i32) -> (i32, i32) {
    %c0_i32 = arith.constant 0 : i32
    %c0_i32_0 = arith.constant 0 : i32
    return %arg0, %c0_i32 : i32, i32
  }
}

</mosaic_0001>

<llo_original>
// kernel: tpu_custom_call.1
$region0: #{tpu_custom_call.1}
  #allocation0 [shape = 'u32[]', space=smem, size = 0x4, offset = 0x4, fixed_abs, tag = 'smem constant byte address 0x4 - core index']
  #allocation1 [shape = 'u32[144,128]{1,0:T(1,128)}', space=vmem, size = 0x12000, scoped, tag = 'internal scratch']
  %s0 = inlined_call_operand.vmem [shape: f32[16,64], index: 0, kind: input, shape index: {}]
  %s1 = inlined_call_operand.vmem [shape: f32[16,4], index: 1, kind: input, shape index: {}]
  %s2 = inlined_call_operand.vmem [shape: f32[64,32], index: 2, kind: input, shape index: {}]
  %s3 = inlined_call_operand.vmem [shape: f32[10,32], index: 3, kind: input, shape index: {}]
  %s4 = inlined_call_operand.hbm [shape: f32[16,32], index: 4, kind: output, shape index: {}]
  %s5 = sld [smem:[#allocation0]]
  $region49: #{tpu_custom_call.1} parent=0
    _
  %s7 = ssub.s32 1, %s5
  %s8 = scalar_select 0, %s7, %s5
  $region1: #{tpu_custom_call.1} parent=0
    #allocation2 [shape = 'u8[8192]{0}', space=vmem, size = 0x2000, scoped, tag = 'output window, operand 0']
    #allocation3 [shape = 's32[2]{0}', space=sflag, size = 0x8, scoped, tag = 'scoped memory for tpu_custom_call.1']
    %9 = vsyncpa [#allocation3], 0
    %s10 = scalar_lea.sflag [#allocation3], 1
    %11 = vsyncpa %s10, 0
    loop: start=0, step=1, limit=4
    $region2: #{tpu_custom_call.1} parent=1 // loop_pre_header
      _
    $region3: #{tpu_custom_call.1} parent=1 // loop_header
      %s13 = sphi 0, %s17
      %p14 = scmp.ge.s32.totalorder %s13, 4
      %s23 = sphi 0, %s25
      %s26 = sphi 0, %s23
      %s27 = sphi 0, %s26
      %s43 = sphi 0, %s27
      %s49 = sphi 0, %s51
      %s52 = sphi 0, %s49
      %s53 = sphi 0, %s52
      %s69 = sphi 0, %s53
      %s73 = sphi 0, %s73
      %s75 = sphi 0, %s73
      %s76 = sphi 0, %s75
      %s90 = sphi 0, %s76
      %s94 = sphi 0, %s94
      %s96 = sphi 0, %s94
      %s97 = sphi 0, %s96
      %s111 = sphi 0, %s97
      %s117 = sphi 0, %s119
      %s120 = sphi 0, %s117
      %s121 = sphi 0, %s120
      %s137 = sphi 0, %s121
    $region4: #{tpu_custom_call.1} parent=1 // loop_header_branch
      %16 = sbr.rel (%p14) target = $region8
    $region5: #{tpu_custom_call.1} parent=1 // loop_body
      %s18 = ssub.s32 %s13, 1
      %s19 = ssub.s32 %s13, 2
      %s20 = sadd.s32 %s13, 1
      %s21 = ssub.s32 %s13, %s20
      %p22 = scmp.eq.s32.totalorder %s21, 0
      %s24 = sadd.s32 %s23, 1
      %s25 = scalar_select %p22, %s23, %s24
      %p28 = pneg %p22
      %p29 = scmp.eq.s32.totalorder %s13, 1
      %p30 = por %p28, %p29
      %p31 = scmp.ne.s32.totalorder %s23, %s26
      %p32 = scmp.eq.s32.totalorder %s13, 0
      %p33 = por %p31, %p32
      %p34 = scmp.ne.s32.totalorder %s23, %s26
      %p35 = scmp.eq.s32.totalorder %s18, 1
      %p36 = por %p34, %p35
      %p37 = scmp.ne.s32.totalorder %s26, %s27
      %p38 = scmp.eq.s32.totalorder %s18, 0
      %p39 = por %p37, %p38
      %p40 = scmp.ne.s32.totalorder %s26, %s27
      %p41 = scmp.eq.s32.totalorder %s19, 1
      %p42 = por %p40, %p41
      %p44 = scmp.ne.s32.totalorder %s27, %s43
      %p45 = scmp.eq.s32.totalorder %s19, 0
      %p46 = por %p44, %p45
      %s47 = ssub.s32 %s13, %s20
      %p48 = scmp.eq.s32.totalorder %s47, 0
      %s50 = sadd.s32 %s49, 1
      %s51 = scalar_select %p48, %s49, %s50
      %p54 = pneg %p48
      %p55 = scmp.eq.s32.totalorder %s13, 1
      %p56 = por %p54, %p55
      %p57 = scmp.ne.s32.totalorder %s49, %s52
      %p58 = scmp.eq.s32.totalorder %s13, 0
      %p59 = por %p57, %p58
      %p60 = scmp.ne.s32.totalorder %s49, %s52
      %p61 = scmp.eq.s32.totalorder %s18, 1
      %p62 = por %p60, %p61
      %p63 = scmp.ne.s32.totalorder %s52, %s53
      %p64 = scmp.eq.s32.totalorder %s18, 0
      %p65 = por %p63, %p64
      %p66 = scmp.ne.s32.totalorder %s52, %s53
      %p67 = scmp.eq.s32.totalorder %s19, 1
      %p68 = por %p66, %p67
      %p70 = scmp.ne.s32.totalorder %s53, %s69
      %p71 = scmp.eq.s32.totalorder %s19, 0
      %p72 = por %p70, %p71
      %s74 = sadd.s32 %s73, 1
      %p77 = scmp.eq.s32.totalorder %s13, 1
      %p78 = scmp.ne.s32.totalorder %s73, %s75
      %p79 = scmp.eq.s32.totalorder %s13, 0
      %p80 = por %p78, %p79
      %p81 = scmp.ne.s32.totalorder %s73, %s75
      %p82 = scmp.eq.s32.totalorder %s18, 1
      %p83 = por %p81, %p82
      %p84 = scmp.ne.s32.totalorder %s75, %s76
      %p85 = scmp.eq.s32.totalorder %s18, 0
      %p86 = por %p84, %p85
      %p87 = scmp.ne.s32.totalorder %s75, %s76
      %p88 = scmp.eq.s32.totalorder %s19, 1
      %p89 = por %p87, %p88
      %p91 = scmp.ne.s32.totalorder %s76, %s90
      %p92 = scmp.eq.s32.totalorder %s19, 0
      %p93 = por %p91, %p92
      %s95 = sadd.s32 %s94, 1
      %p98 = scmp.eq.s32.totalorder %s13, 1
      %p99 = scmp.ne.s32.totalorder %s94, %s96
      %p100 = scmp.eq.s32.totalorder %s13, 0
      %p101 = por %p99, %p100
      %p102 = scmp.ne.s32.totalorder %s94, %s96
      %p103 = scmp.eq.s32.totalorder %s18, 1
      %p104 = por %p102, %p103
      %p105 = scmp.ne.s32.totalorder %s96, %s97
      %p106 = scmp.eq.s32.totalorder %s18, 0
      %p107 = por %p105, %p106
      %p108 = scmp.ne.s32.totalorder %s96, %s97
      %p109 = scmp.eq.s32.totalorder %s19, 1
      %p110 = por %p108, %p109
      %p112 = scmp.ne.s32.totalorder %s97, %s111
      %p113 = scmp.eq.s32.totalorder %s19, 0
      %p114 = por %p112, %p113
      %s115 = ssub.s32 %s13, %s20
      %p116 = scmp.eq.s32.totalorder %s115, 0
      %s118 = sadd.s32 %s117, 1
      %s119 = scalar_select %p116, %s117, %s118
      %p122 = pneg %p116
      %p123 = scmp.eq.s32.totalorder %s13, 1
      %p124 = por %p122, %p123
      %p125 = scmp.ne.s32.totalorder %s117, %s120
      %p126 = scmp.eq.s32.totalorder %s13, 0
      %p127 = por %p125, %p126
      %p128 = scmp.ne.s32.totalorder %s117, %s120
      %p129 = scmp.eq.s32.totalorder %s18, 1
      %p130 = por %p128, %p129
      %p131 = scmp.ne.s32.totalorder %s120, %s121
      %p132 = scmp.eq.s32.totalorder %s18, 0
      %p133 = por %p131, %p132
      %p134 = scmp.ne.s32.totalorder %s120, %s121
      %p135 = scmp.eq.s32.totalorder %s19, 1
      %p136 = por %p134, %p135
      %p138 = scmp.ne.s32.totalorder %s121, %s137
      %p139 = scmp.eq.s32.totalorder %s19, 0
      %p140 = por %p138, %p139
      %p141 = scmp.le.s32.totalorder 1, %s13
      %p142 = scmp.lt.s32.totalorder %s13, 3
      %p143 = pnand %p141, %p142
      %p144 = pneg %p143
      // Predicated region
      $region9: #{tpu_custom_call.1} parent=5 // pred_check
        _
      $region10: #{tpu_custom_call.1} parent=5 // pred_check_branch
        %146 = sbr.rel (%p143) target = $region12
      $region11: #{tpu_custom_call.1} parent=5 // pred_region
        %s147 = ssub.s32 %s13, 1
        // Predicated region
        $region13: #{tpu_custom_call.1} parent=11 // pred_check
          %p148 = pneg %p86
        $region14: #{tpu_custom_call.1} parent=11 // pred_check_branch
          %150 = sbr.rel (%p148) target = $region16
        $region15: #{tpu_custom_call.1} parent=11 // pred_region
          _
        $region16: #{tpu_custom_call.1} parent=11 // pred_fallthru
          _
        // Predicated region
        $region17: #{tpu_custom_call.1} parent=11 // pred_check
          %p151 = pneg %p107
        $region18: #{tpu_custom_call.1} parent=11 // pred_check_branch
          %153 = sbr.rel (%p151) target = $region20
        $region19: #{tpu_custom_call.1} parent=11 // pred_region
          _
        $region20: #{tpu_custom_call.1} parent=11 // pred_fallthru
          _
      $region12: #{tpu_custom_call.1} parent=5 // pred_fallthru
        _
      %p154 = scmp.lt.s32.totalorder %s13, 2
      // Predicated region
      $region21: #{tpu_custom_call.1} parent=5 // pred_check
        %p155 = pneg %p154
      $region22: #{tpu_custom_call.1} parent=5 // pred_check_branch
        %157 = sbr.rel (%p155) target = $region24
      $region23: #{tpu_custom_call.1} parent=5 // pred_region
        // Predicated region
        $region25: #{tpu_custom_call.1} parent=23 // pred_check
          %p158 = pneg %p33
        $region26: #{tpu_custom_call.1} parent=23 // pred_check_branch
          %160 = sbr.rel (%p158) target = $region28
        $region27: #{tpu_custom_call.1} parent=23 // pred_region
          %p161 = scmp.lt.s32.totalorder %s13, 1
          %s162 = scalar_select %p161, %s13, 1
          %s163 = smul.addr %s162, 8
          %s164 = scalar_lea.vmem %s0, %s163
        $region28: #{tpu_custom_call.1} parent=23 // pred_fallthru
          _
        // Predicated region
        $region29: #{tpu_custom_call.1} parent=23 // pred_check
          %p165 = pneg %p59
        $region30: #{tpu_custom_call.1} parent=23 // pred_check_branch
          %167 = sbr.rel (%p165) target = $region32
        $region31: #{tpu_custom_call.1} parent=23 // pred_region
          %p168 = scmp.lt.s32.totalorder %s13, 1
          %s169 = scalar_select %p168, %s13, 1
          %s170 = smul.addr %s169, 8
          %s171 = scalar_lea.vmem %s1, %s170
        $region32: #{tpu_custom_call.1} parent=23 // pred_fallthru
          _
      $region24: #{tpu_custom_call.1} parent=5 // pred_fallthru
        _
      %p172 = scmp.le.s32.totalorder 1, %s13
      %p173 = scmp.lt.s32.totalorder %s13, 3
      %p174 = pnand %p172, %p173
      %p175 = pneg %p174
      // Predicated region
      $region33: #{tpu_custom_call.1} parent=5 // pred_check
        _
      $region34: #{tpu_custom_call.1} parent=5 // pred_check_branch
        %177 = sbr.rel (%p174) target = $region36
      $region35: #{tpu_custom_call.1} parent=5 // pred_region
        %s178 = ssub.s32 %s13, 1
        %p179 = scmp.lt.s32.totalorder %s18, 1
        %s180 = scalar_select %p179, %s18, 1
        %s181 = smul.addr %s180, 8
        %s182 = scalar_lea.vmem %s0, %s181
        %p183 = pneg %p39
        %p184 = pneg %p36
        %p185 = scmp.lt.s32.totalorder %s18, 1
        %s186 = scalar_select %p185, %s18, 1
        %s187 = smul.addr %s186, 8
        %s188 = scalar_lea.vmem %s1, %s187
        %p189 = pneg %p65
        %p190 = pneg %p62
        %p191 = pneg %p86
        %p192 = pneg %p83
        %p193 = pneg %p107
        %p194 = pneg %p104
        %p195 = pneg %p133
        %p196 = pneg %p130
        %s197 = sand.u32 %s120, 1
        %s198 = scalar_lea.sflag [#allocation3], %s197
        %s199 = sand.u32 %s120, 1
        %s200 = smul.addr %s199, 8
        %s201 = scalar_lea.vmem [#allocation2], %s200
        %p202 = scmp.lt.s32.totalorder %s18, 1
        %s203 = scalar_select %p202, %s18, 1
        %s204 = smul.addr %s203, 8
        %s205 = scalar_lea.vmem %s0, %s204
        %p206 = scmp.lt.s32.totalorder %s18, 1
        %s207 = scalar_select %p206, %s18, 1
        %s208 = smul.addr %s207, 8
        %s209 = scalar_lea.vmem %s1, %s208
        %v210 = vld [vmem:[%s3] sm:$0xff]
        %v211 = vld [vmem:[%s3 + $0x8] sm:$0x3]
        %v212 = vld [vmem:[%s205] sm:$0xff]
        %v213 = vld [vmem:[%s2] sm:$0xff]
        %v214 = vld [vmem:[%s2 + $0x8] sm:$0xff]
        %v215 = vld [vmem:[%s2 + $0x10] sm:$0xff]
        %v216 = vld [vmem:[%s2 + $0x18] sm:$0xff]
        %v217 = vld [vmem:[%s2 + $0x20] sm:$0xff]
        %v218 = vld [vmem:[%s2 + $0x28] sm:$0xff]
        %v219 = vld [vmem:[%s2 + $0x30] sm:$0xff]
        %v220 = vld [vmem:[%s2 + $0x38] sm:$0xff]
        %v221 = vlaneseq
        %v222 = vshrl.u32 %v221, 7
        %v223 = vsub.s32 4, %v222
        %v224 = vrot.slane %v210, %v223
        %vm225 = vcmask 523264
        %v227 = vsel %vm225, %v212, 0
        %229 = vmatprep.subr.mxu0 0.0
        %230 = vmatpush1.msra.mxu0 %v213
        %231 = vmatprep.subr.mxu0 0.0
        %232 = vmatpush1.msra.mxu0 %v214
        %233 = vmatprep.subr.mxu0 0.0
        %234 = vmatpush1.msra.mxu0 %v215
        %235 = vmatprep.subr.mxu0 0.0
        %236 = vmatpush1.msra.mxu0 %v216
        %237 = vmatprep.subr.mxu0 0.0
        %238 = vmatpush1.msra.mxu0 %v217
        %239 = vmatprep.subr.mxu0 0.0
        %240 = vmatpush1.msra.mxu0 %v218
        %241 = vmatprep.subr.mxu0 0.0
        %242 = vmatpush1.msra.mxu0 %v219
        %243 = vmatprep.subr.mxu0 0.0
        %244 = vmatpush1.msra.mxu0 %v220
        %245 = vmatprep.subr.mxu0 0.0
        %246 = vmatpush1.msra.mxu0 0.0
        %247 = vmatprep.subr.mxu0 0.0
        %248 = vmatpush1.msra.mxu0 0.0
        %249 = vmatprep.subr.mxu0 0.0
        %250 = vmatpush1.msra.mxu0 0.0
        %251 = vmatprep.subr.mxu0 0.0
        %252 = vmatpush1.msra.mxu0 0.0
        %253 = vmatprep.subr.mxu0 0.0
        %254 = vmatpush1.msra.mxu0 0.0
        %255 = vmatprep.subr.mxu0 0.0
        %256 = vmatpush1.msra.mxu0 0.0
        %257 = vmatprep.subr.mxu0 0.0
        %258 = vmatpush1.msra.mxu0 0.0
        %259 = vmatprep.subr.mxu0 0.0
        %260 = vmatpush1.msra.mxu0 0.0
        %261 = vmatprep.subr.mxu0 0.0
        %262 = vmatpush1.msra.mxu0 0.0
        %263 = vmatprep.subr.mxu0 0.0
        %264 = vmatpush1.msra.mxu0 0.0
        %265 = vmatprep.subr.mxu0 0.0
        %266 = vmatpush1.msra.mxu0 0.0
        %267 = vmatprep.subr.mxu0 0.0
        %268 = vmatpush1.msra.mxu0 0.0
        %269 = vmatprep.subr.mxu0 0.0
        %270 = vmatpush1.msra.mxu0 0.0
        %271 = vmatprep.subr.mxu0 0.0
        %272 = vmatpush1.msra.mxu0 0.0
        %273 = vmatprep.subr.mxu0 0.0
        %274 = vmatpush1.msra.mxu0 0.0
        %275 = vmatprep.subr.mxu0 0.0
        %276 = vmatpush1.msra.mxu0 0.0
        %277 = vmatprep.subr.mxu0 0.0
        %278 = vmatpush1.msra.mxu0 0.0
        %279 = vmatprep.subr.mxu0 0.0
        %280 = vmatpush1.msra.mxu0 0.0
        %281 = vmatprep.subr.mxu0 0.0
        %282 = vmatpush1.msra.mxu0 0.0
        %283 = vmatprep.subr.mxu0 0.0
        %284 = vmatpush1.msra.mxu0 0.0
        %285 = vmatprep.subr.mxu0 0.0
        %286 = vmatpush1.msra.mxu0 0.0
        %287 = vmatprep.subr.mxu0 0.0
        %288 = vmatpush1.msra.mxu0 0.0
        %289 = vmatprep.subr.mxu0 0.0
        %290 = vmatpush1.msra.mxu0 0.0
        %291 = vmatprep.subr.mxu0 0.0
        %292 = vmatpush1.msra.mxu0 0.0
        %293 = vmatprep.mubr.f32.mxu0 0.0
        %294 = vmatmul.mubr.f32.gmra.mrb[0].mxu0 %v227
        %v295 = vpop.f32.mrb[0].mxu0
        %v296 = vadd.f32 %v224, %v295
        %v297 = vpop.f32.mrb[0].mxu0
        %298 = vdwg.mxu0
        %vm299 = vcmask 261120
        %v300 = vsel %vm299, %v296, 0.0
        %301 = vadd.xlane.f32.xlu0 %v300
        %v302 = vpop.xlane.xlu0 %301
        %v303 = vrcp.pop 32.0
        %v304 = vmul.f32 %v302, %v303
        %v305 = vmul.f32 %v296, %v296
        %v306 = vsel %vm299, %v305, 0.0
        %307 = vadd.xlane.f32.xlu0 %v306
        %v308 = vpop.xlane.xlu0 %307
        %v309 = vmul.f32 %v308, %v303
        %v310 = vmul.f32 %v304, %v304
        %v311 = vsub.f32 %v309, %v310
        %v312 = vsub.f32 %v296, %v304
        %v313 = vadd.f32 %v311, 1e-12
        %v314 = vrsqrt.pop %v313
        %v315 = vmul.f32 %v312, %v314
        %v316 = vlaneseq
        %v317 = vshrl.u32 %v316, 7
        %v318 = vsub.s32 5, %v317
        %v319 = vrot.slane %v210, %v318
        %v320 = vmul.f32 %v315, %v319
        %v321 = vlaneseq
        %v322 = vshrl.u32 %v321, 7
        %v323 = vsub.s32 6, %v322
        %v324 = vrot.slane %v210, %v323
        %v325 = vadd.f32 %v320, %v324
        %v326 = vld [vmem:[%s209] sm:$0xff]
        %v327 = vlaneseq
        %v328 = vshrl.u32 %v327, 7
        %v329 = vsub.s32 7, %v328
        %v330 = vrot.slane %v210, %v329
        %332 = vset.pattern.permute.xlu0 0
        %333 = vperm.xlu0 %332, %v326
        %v334 = vpop.permute.xlu0 %333
        %v336 = vlaneseq
        %v337 = vshrl.u32 %v336, 7
        %v338 = vsub.s32 0, %v337
        %v339 = vrot.slane %v210, %v338
        %v340 = vmul.f32 %v334, %v339
        %v341 = vadd.f32 %v330, %v340
        %342 = vset.pattern.permute.xlu0 1
        %343 = vperm.xlu0 %342, %v326
        %v344 = vpop.permute.xlu0 %343
        %v346 = vlaneseq
        %v347 = vshrl.u32 %v346, 7
        %v348 = vsub.s32 1, %v347
        %v349 = vrot.slane %v210, %v348
        %v350 = vmul.f32 %v344, %v349
        %v351 = vadd.f32 %v341, %v350
        %352 = vset.pattern.permute.xlu0 2
        %353 = vperm.xlu0 %352, %v326
        %v354 = vpop.permute.xlu0 %353
        %v356 = vlaneseq
        %v357 = vshrl.u32 %v356, 7
        %v358 = vsub.s32 2, %v357
        %v359 = vrot.slane %v210, %v358
        %v360 = vmul.f32 %v354, %v359
        %v361 = vadd.f32 %v351, %v360
        %362 = vset.pattern.permute.xlu0 3
        %363 = vperm.xlu0 %362, %v326
        %v364 = vpop.permute.xlu0 %363
        %v366 = vlaneseq
        %v367 = vshrl.u32 %v366, 7
        %v368 = vsub.s32 3, %v367
        %v369 = vrot.slane %v210, %v368
        %v370 = vmul.f32 %v364, %v369
        %v371 = vadd.f32 %v361, %v370
        %v372 = vsel %vm299, %v371, 0.0
        %373 = vadd.xlane.f32.xlu0 %v372
        %v374 = vpop.xlane.xlu0 %373
        %v375 = vmul.f32 %v374, %v303
        %v376 = vmul.f32 %v371, %v371
        %v377 = vsel %vm299, %v376, 0.0
        %378 = vadd.xlane.f32.xlu0 %v377
        %v379 = vpop.xlane.xlu0 %378
        %v380 = vmul.f32 %v379, %v303
        %v381 = vmul.f32 %v375, %v375
        %v382 = vsub.f32 %v380, %v381
        %v383 = vsub.f32 %v371, %v375
        %v384 = vadd.f32 %v382, 1e-12
        %v385 = vrsqrt.pop %v384
        %v386 = vmul.f32 %v383, %v385
        %v387 = vlaneseq
        %v388 = vshrl.u32 %v387, 7
        %v389 = vsub.s32 0, %v388
        %v390 = vrot.slane %v211, %v389
        %v391 = vmul.f32 %v386, %v390
        %v392 = vlaneseq
        %v393 = vshrl.u32 %v392, 7
        %v394 = vsub.s32 1, %v393
        %v395 = vrot.slane %v211, %v394
        %v396 = vadd.f32 %v391, %v395
        %v397 = vadd.f32 %v325, %v396
        %398 = vst.msk [vmem:[%s201] sm:$0xff] %vm299, %v397
        %s399 = sand.u32 %s120, 1
        %s400 = scalar_lea.sflag [#allocation3], %s399
        %s401 = sand.u32 %s120, 1
        %s402 = smul.addr %s401, 8
        %s403 = scalar_lea.vmem [#allocation2], %s402
        // Predicated region
        $region37: #{tpu_custom_call.1} parent=35 // pred_check
          %p404 = pneg %p130
        $region38: #{tpu_custom_call.1} parent=35 // pred_check_branch
          %406 = sbr.rel (%p404) target = $region40
        $region39: #{tpu_custom_call.1} parent=35 // pred_region
          %s408 = ssub.s32 128, 128
          %409 = vsyncadd %s400, %s408
          %s410 = smul.addr %s18, 128
          %s411 = scalar_lea.hbm %s4, %s410
          %s413 = sshll.u32 %s403, 4
          %s414 = int_to_ptr.vmem [resolvable:$true] %s413
          %416 = dma.vmem_to_hbm [thread:$0]  %s414, 128, %s411, %s400
        $region40: #{tpu_custom_call.1} parent=35 // pred_fallthru
          _
      $region36: #{tpu_custom_call.1} parent=5 // pred_fallthru
        _
      %p417 = scmp.le.s32.totalorder 2, %s13
      // Predicated region
      $region41: #{tpu_custom_call.1} parent=5 // pred_check
        %p418 = pneg %p417
      $region42: #{tpu_custom_call.1} parent=5 // pred_check_branch
        %420 = sbr.rel (%p418) target = $region44
      $region43: #{tpu_custom_call.1} parent=5 // pred_region
        %s421 = ssub.s32 %s13, 2
        // Predicated region
        $region45: #{tpu_custom_call.1} parent=43 // pred_check
          %p422 = pneg %p136
        $region46: #{tpu_custom_call.1} parent=43 // pred_check_branch
          %424 = sbr.rel (%p422) target = $region48
        $region47: #{tpu_custom_call.1} parent=43 // pred_region
          %s425 = sand.u32 %s121, 1
          %s426 = scalar_lea.sflag [#allocation3], %s425
          %s427 = sand.u32 %s121, 1
          %s428 = smul.addr %s427, 8
          %s429 = scalar_lea.vmem [#allocation2], %s428
          %430 = dma.done %s426, 128
        $region48: #{tpu_custom_call.1} parent=43 // pred_fallthru
          _
      $region44: #{tpu_custom_call.1} parent=5 // pred_fallthru
        _
    $region6: #{tpu_custom_call.1} parent=1 // loop_footer
      %s17 = sadd.s32 1, %s13
    $region7: #{tpu_custom_call.1} parent=1 // loop_footer_branch
      %12 = sbr.rel target = $region3
    $region8: #{tpu_custom_call.1} parent=1 // loop_exit
      _
    %431 = vsyncpa [#allocation3], 1
    %s432 = scalar_lea.sflag [#allocation3], 1
    %433 = vsyncpa %s432, 1

</llo_original>
